<compile_context>
chip_gen: v6e
topology: v6e:2x2x1
jax: 0.10.0
libtpu: 0.0.40
codegen_flags: <defaults>
</compile_context>

<pallas_src>
import functools

import jax
import jax.numpy as jnp
import numpy as np
from jax.experimental import pallas as pl
from jax.experimental.pallas import tpu as pltpu


def ffn_kernel(x_ref, wffn_ref, wo_ref, o_ref, *, mxu_dtype):
    """Whole-problem kernel (no grid).

    x_ref   : (B, D, L)  input, D == L
    wffn_ref: (L, L)     nn.Linear `ffn` weight, (out, in) layout
    wo_ref  : (L, L)     nn.Linear `Wo` weight,  (out, in) layout
    o_ref   : (D, L)     output (batch dim summed away)
    """
    B = x_ref.shape[0]
    L = x_ref.shape[-1]
    inv_L = jnp.float32(1.0 / L)                 # precomputed reciprocal

    x = x_ref[...].astype(jnp.float32)           # (B, D, L)

    # RMS-style norm over the last (lane) axis: lane reduction + one EUP rsqrt,
    # no sqrt + divide.  Kept in f32 (v5e has no bf16 VPU/EUP path).
    ms = jnp.mean(x * x, axis=-1, keepdims=True)
    norm_x = x * jax.lax.rsqrt(ms + jnp.float32(1e-9))      # (B, D, L) f32

    # Fold 1/L into the (L, L) weight: one weight-sized multiply instead of B
    # activation-sized ones (valid because relu(a*y) == a*relu(y), a > 0).
    wffn = (wffn_ref[...].astype(jnp.float32) * inv_L).astype(mxu_dtype)  # (L, D)
    wo = wo_ref[...].astype(mxu_dtype)                                    # (L, L)

    # sum over batch of ( relu((W_ffn/L) @ norm_x[b]) + x[b] ), f32 accumulation.
    acc = jnp.sum(x, axis=0)                     # residual part, (D, L) f32
    for b in range(B):                           # static unroll; B is small
        y = jnp.dot(wffn, norm_x[b].astype(mxu_dtype),
                    preferred_element_type=jnp.float32)     # (D, L), 2-D MXU matmul
        acc = acc + jnp.maximum(y, 0.0)

    # Output projection: out[d, o] = sum_l acc[d, l] * W_o[o, l]  (== acc @ W_o.T),
    # expressed via dot_general so no weight transpose is ever materialized.
    out = jax.lax.dot_general(
        acc.astype(mxu_dtype), wo,
        dimension_numbers=(((1,), (1,)), ((), ())),
        preferred_element_type=jnp.float32)
    o_ref[...] = out.astype(o_ref.dtype)


def ffn_forward(x, w_ffn, w_o, *, mxu_dtype=jnp.float32):
    if x.ndim != 3:
        raise ValueError(f"x must have three dimensions, got shape {x.shape}")
    B, D, L = x.shape
    if w_ffn.shape != (L, L) or w_o.shape != (L, L):
        raise ValueError("weights must be (sequence_len, sequence_len) matching x[-1]")
    if D != L:
        raise ValueError("the transposed Linear requires x.shape[1] == sequence_len")

    kernel = functools.partial(ffn_kernel, mxu_dtype=mxu_dtype)
    return pl.pallas_call(
        kernel,
        out_shape=jax.ShapeDtypeStruct((D, L), x.dtype),
        in_specs=[
            pl.BlockSpec(memory_space=pltpu.MemorySpace.VMEM),   # x (whole array)
            pl.BlockSpec(memory_space=pltpu.MemorySpace.VMEM),   # W_ffn (resident)
            pl.BlockSpec(memory_space=pltpu.MemorySpace.VMEM),   # W_o   (resident)
        ],
        out_specs=pl.BlockSpec(memory_space=pltpu.MemorySpace.VMEM),
    )(x, w_ffn, w_o)


def ffn_reference(x, w_ffn, w_o):
    """Pure-JAX mirror of the PyTorch forward, for verification."""
    L = x.shape[-1]
    norm_x = x / jnp.sqrt(jnp.mean(x * x, axis=-1, keepdims=True) + 1e-9)
    t = jnp.swapaxes(norm_x, -1, -2)                       # (B, L, D)
    y = jnp.maximum(jnp.einsum('bld,od->blo', t, w_ffn), 0.0) / L
    ffn_x = jnp.swapaxes(y, -1, -2)                        # (B, D, L)
    add_x = ffn_x + x
    sum_x = jnp.sum(add_x, axis=0)                         # (D, L)
    return jnp.einsum('dl,ol->do', sum_x, w_o)


def xavier_normal(key, shape, gain):
    fan_out, fan_in = shape
    std = gain * np.sqrt(2.0 / (fan_in + fan_out))
    return std * jax.random.normal(key, shape, dtype=jnp.float32)


if __name__ == "__main__":
    sequence_len = 16
    B = 2
    D = sequence_len           # transposed Linear requires D == sequence_len
    L = sequence_len

    key = jax.random.PRNGKey(0)
    kx, kffn, kwo = jax.random.split(key, 3)

    x = jax.random.normal(kx, (B, D, L), dtype=jnp.float32)
    # nn.init.xavier_normal_ with relu gain (sqrt(2)) for ffn, linear gain (1) for Wo
    w_ffn = xavier_normal(kffn, (L, L), gain=np.sqrt(2.0))
    w_o = xavier_normal(kwo, (L, L), gain=1.0)

    ref = ffn_reference(x, w_ffn, w_o)

    # f32 MXU operands: exact parity with the PyTorch module.
    out = jax.block_until_ready(ffn_forward(x, w_ffn, w_o))
    np.testing.assert_allclose(np.asarray(out), np.asarray(ref),
                               rtol=1e-5, atol=1e-5)

    # TODO(synk): rank_cal / file logging and the (epoch, mode, batch) arguments in
    # the PyTorch module are host-side bookkeeping and are intentionally not
    # reproduced in the kernel.
    print("KERNEL_OK")
</pallas_src>

<mosaic_0001>
module attributes {stable_mosaic.version = 11 : i64} {
  func.func @ffn_kernel(%arg0: memref<2x16x16xf32, #tpu.memory_space<vmem>>, %arg1: memref<16x16xf32, #tpu.memory_space<vmem>>, %arg2: memref<16x16xf32, #tpu.memory_space<vmem>>, %arg3: memref<16x16xf32, #tpu.memory_space<vmem>>) attributes {dimension_semantics = [], scalar_prefetch = 0 : i64, scratch_operands = 0 : i64, tpu.core_type = #tpu.core_type<tc>} {
    %c0 = arith.constant 0 : index
    %c0_0 = arith.constant 0 : index
    %c0_1 = arith.constant 0 : index
    %0 = vector.load %arg0[%c0, %c0_0, %c0_1] : memref<2x16x16xf32, #tpu.memory_space<vmem>>, vector<2x16x16xf32>
    %1 = arith.mulf %0, %0 : vector<2x16x16xf32>
    %cst = arith.constant dense<0.000000e+00> : vector<2x16xf32>
    %2 = vector.multi_reduction <add>, %1, %cst [2] : vector<2x16x16xf32> to vector<2x16xf32>
    %3 = vector.shape_cast %2 : vector<2x16xf32> to vector<2x16x1xf32>
    %cst_2 = arith.constant 1.600000e+01 : f32
    %4 = vector.broadcast %cst_2 : f32 to vector<2x16x1xf32>
    %5 = arith.divf %3, %4 : vector<2x16x1xf32>
    %cst_3 = arith.constant 9.99999971E-10 : f32
    %6 = vector.broadcast %cst_3 : f32 to vector<2x16x1xf32>
    %7 = arith.addf %5, %6 : vector<2x16x1xf32>
    %8 = math.rsqrt %7 : vector<2x16x1xf32>
    %9 = vector.broadcast %8 : vector<2x16x1xf32> to vector<2x16x16xf32>
    %10 = arith.mulf %0, %9 : vector<2x16x16xf32>
    %c0_4 = arith.constant 0 : index
    %c0_5 = arith.constant 0 : index
    %11 = vector.load %arg1[%c0_4, %c0_5] : memref<16x16xf32, #tpu.memory_space<vmem>>, vector<16x16xf32>
    %cst_6 = arith.constant 6.250000e-02 : f32
    %12 = vector.broadcast %cst_6 : f32 to vector<16x16xf32>
    %13 = arith.mulf %11, %12 : vector<16x16xf32>
    %c0_7 = arith.constant 0 : index
    %c0_8 = arith.constant 0 : index
    %14 = vector.load %arg2[%c0_7, %c0_8] : memref<16x16xf32, #tpu.memory_space<vmem>>, vector<16x16xf32>
    %cst_9 = arith.constant dense<0.000000e+00> : vector<16x16xf32>
    %15 = vector.multi_reduction <add>, %0, %cst_9 [0] : vector<2x16x16xf32> to vector<16x16xf32>
    %16 = vector.extract_strided_slice %10 {offsets = [0, 0, 0], sizes = [1, 16, 16], strides = [1, 1, 1]} : vector<2x16x16xf32> to vector<1x16x16xf32>
    %17 = vector.shape_cast %16 : vector<1x16x16xf32> to vector<16x16xf32>
    %cst_10 = arith.constant dense<0.000000e+00> : vector<16x16xf32>
    %18 = tpu.matmul %13, %17, %cst_10 {dimension_numbers = #tpu.dot_dimension_numbers<[1], [0], [0], [1], [0, 0, 1, 1], [], []>} : vector<16x16xf32>, vector<16x16xf32>, vector<16x16xf32> -> vector<16x16xf32>
    %cst_11 = arith.constant 0.000000e+00 : f32
    %19 = vector.broadcast %cst_11 : f32 to vector<16x16xf32>
    %20 = arith.maximumf %18, %19 : vector<16x16xf32>
    %21 = arith.addf %15, %20 : vector<16x16xf32>
    %22 = vector.extract_strided_slice %10 {offsets = [1, 0, 0], sizes = [1, 16, 16], strides = [1, 1, 1]} : vector<2x16x16xf32> to vector<1x16x16xf32>
    %23 = vector.shape_cast %22 : vector<1x16x16xf32> to vector<16x16xf32>
    %cst_12 = arith.constant dense<0.000000e+00> : vector<16x16xf32>
    %24 = tpu.matmul %13, %23, %cst_12 {dimension_numbers = #tpu.dot_dimension_numbers<[1], [0], [0], [1], [0, 0, 1, 1], [], []>} : vector<16x16xf32>, vector<16x16xf32>, vector<16x16xf32> -> vector<16x16xf32>
    %cst_13 = arith.constant 0.000000e+00 : f32
    %25 = vector.broadcast %cst_13 : f32 to vector<16x16xf32>
    %26 = arith.maximumf %24, %25 : vector<16x16xf32>
    %27 = arith.addf %21, %26 : vector<16x16xf32>
    %cst_14 = arith.constant dense<0.000000e+00> : vector<16x16xf32>
    %28 = tpu.matmul %27, %14, %cst_14 {dimension_numbers = #tpu.dot_dimension_numbers<[1], [1], [0], [0], [0, 0, 1, 0], [], []>} : vector<16x16xf32>, vector<16x16xf32>, vector<16x16xf32> -> vector<16x16xf32>
    %c0_15 = arith.constant 0 : index
    %c0_16 = arith.constant 0 : index
    %29 = vector.load %arg3[%c0_15, %c0_16] : memref<16x16xf32, #tpu.memory_space<vmem>>, vector<16x16xf32>
    tpu.vector_store %arg3[%c0_15, %c0_16], %28 {strides = array<i32>} : memref<16x16xf32, #tpu.memory_space<vmem>>, vector<16x16xf32>,
    return
  }
}

</mosaic_0001>

<llo_original>
// kernel: tpu_custom_call.1
$region0: #{tpu_custom_call.1}
  #allocation0 [shape = 'u32[]', space=smem, size = 0x4, offset = 0x4, fixed_abs, tag = 'smem constant byte address 0x4 - core index']
  #allocation1 [shape = 'u32[144,128]{1,0:T(1,128)}', space=vmem, size = 0x12000, scoped, tag = 'internal scratch']
  %s0 = inlined_call_operand.hbm [shape: f32[2,16,16], index: 0, kind: input, shape index: {}]
  %s1 = inlined_call_operand.hbm [shape: f32[16,16], index: 1, kind: input, shape index: {}]
  %s2 = inlined_call_operand.hbm [shape: f32[16,16], index: 2, kind: input, shape index: {}]
  %s3 = inlined_call_operand.hbm [shape: f32[16,16], index: 3, kind: output, shape index: {}]
  %s4 = sld [smem:[#allocation0]]
  $region34: #{tpu_custom_call.1} parent=0
    _
  %s6 = ssub.s32 1, %s4
  %s7 = scalar_select 0, %s6, %s4
  $region1: #{tpu_custom_call.1} parent=0
    #allocation2 [shape = 'u8[16384]{0}', space=vmem, size = 0x4000, scoped, tag = 'input window, operand 0, single buffered']
    #allocation3 [shape = 's32[1]{0}', space=sflag, size = 0x4, scoped, tag = 'scoped memory for tpu_custom_call.1']
    #allocation4 [shape = 's32[1]{0}', space=sflag, size = 0x4, scoped, tag = 'scoped memory for tpu_custom_call.1']
    #allocation5 [shape = 'u8[8192]{0}', space=vmem, size = 0x2000, scoped, tag = 'input window, operand 1, single buffered']
    #allocation6 [shape = 's32[1]{0}', space=sflag, size = 0x4, scoped, tag = 'scoped memory for tpu_custom_call.1']
    #allocation7 [shape = 'u8[8192]{0}', space=vmem, size = 0x2000, scoped, tag = 'input window, operand 2, single buffered']
    #allocation8 [shape = 'u8[8192]{0}', space=vmem, size = 0x2000, scoped, tag = 'output window, operand 0, single buffered']
    %8 = vsyncpa [#allocation3], 0
    %9 = vsyncpa [#allocation6], 0
    %10 = vsyncpa [#allocation4], 0
    // Predicated region
    $region2: #{tpu_custom_call.1} parent=1 // pred_check
      _
    $region3: #{tpu_custom_call.1} parent=1 // pred_check_branch
      %12 = sbr.rel (0) target = $region5
    $region4: #{tpu_custom_call.1} parent=1 // pred_region
      %s14 = ssub.s32 512, 512
      %15 = vsyncadd [#allocation3], %s14
      %s16 = sshll.u32 [#allocation2], 4
      %s17 = int_to_ptr.vmem [resolvable:$true] %s16
      %22 = dma.hbm_to_vmem [thread:$0]  %s0, 512, %s17, [#allocation3], 128, 128, 8
    $region5: #{tpu_custom_call.1} parent=1 // pred_fallthru
      _
    // Predicated region
    $region6: #{tpu_custom_call.1} parent=1 // pred_check
      _
    $region7: #{tpu_custom_call.1} parent=1 // pred_check_branch
      %24 = sbr.rel (0) target = $region9
    $region8: #{tpu_custom_call.1} parent=1 // pred_region
      %s26 = ssub.s32 256, 256
      %27 = vsyncadd [#allocation6], %s26
      %s28 = sshll.u32 [#allocation5], 4
      %s29 = int_to_ptr.vmem [resolvable:$true] %s28
      %34 = dma.hbm_to_vmem [thread:$0]  %s1, 256, %s29, [#allocation6], 128, 128, 8
    $region9: #{tpu_custom_call.1} parent=1 // pred_fallthru
      _
    // Predicated region
    $region10: #{tpu_custom_call.1} parent=1 // pred_check
      _
    $region11: #{tpu_custom_call.1} parent=1 // pred_check_branch
      %36 = sbr.rel (0) target = $region13
    $region12: #{tpu_custom_call.1} parent=1 // pred_region
      %s38 = ssub.s32 256, 256
      %39 = vsyncadd [#allocation6], %s38
      %s40 = sshll.u32 [#allocation7], 4
      %s41 = int_to_ptr.vmem [resolvable:$true] %s40
      %46 = dma.hbm_to_vmem [thread:$0]  %s2, 256, %s41, [#allocation6], 128, 128, 8
    $region13: #{tpu_custom_call.1} parent=1 // pred_fallthru
      _
    // Predicated region
    $region14: #{tpu_custom_call.1} parent=1 // pred_check
      _
    $region15: #{tpu_custom_call.1} parent=1 // pred_check_branch
      %48 = sbr.rel (0) target = $region17
    $region16: #{tpu_custom_call.1} parent=1 // pred_region
      %49 = dma.done [#allocation3], 512
    $region17: #{tpu_custom_call.1} parent=1 // pred_fallthru
      _
    // Predicated region
    $region18: #{tpu_custom_call.1} parent=1 // pred_check
      _
    $region19: #{tpu_custom_call.1} parent=1 // pred_check_branch
      %51 = sbr.rel (0) target = $region21
    $region20: #{tpu_custom_call.1} parent=1 // pred_region
      %52 = dma.done [#allocation6], 256
    $region21: #{tpu_custom_call.1} parent=1 // pred_fallthru
      _
    // Predicated region
    $region22: #{tpu_custom_call.1} parent=1 // pred_check
      _
    $region23: #{tpu_custom_call.1} parent=1 // pred_check_branch
      %54 = sbr.rel (0) target = $region25
    $region24: #{tpu_custom_call.1} parent=1 // pred_region
      %55 = dma.done [#allocation6], 256
    $region25: #{tpu_custom_call.1} parent=1 // pred_fallthru
      _
    %v56 = vld [vmem:[#allocation2] sm:$0xff]
    %v57 = vld [vmem:[#allocation2 + $0x8] sm:$0xff]
    %v58 = vld [vmem:[#allocation2 + $0x10] sm:$0xff]
    %v59 = vld [vmem:[#allocation2 + $0x18] sm:$0xff]
    %v60 = vmul.f32 %v56, %v56
    %v61 = vmul.f32 %v57, %v57
    %v62 = vmul.f32 %v58, %v58
    %v63 = vmul.f32 %v59, %v59
    %vm64 = vcmask 130048
    %v65 = vsel %vm64, %v60, 0.0
    %66 = vadd.xlane.f32.xlu0 %v65
    %v67 = vpop.xlane.xlu0 %66
    %v68 = vsel %vm64, %v61, 0.0
    %69 = vadd.xlane.f32.xlu0 %v68
    %v70 = vpop.xlane.xlu0 %69
    %v71 = vsel %vm64, %v62, 0.0
    %72 = vadd.xlane.f32.xlu0 %v71
    %v73 = vpop.xlane.xlu0 %72
    %v74 = vsel %vm64, %v63, 0.0
    %75 = vadd.xlane.f32.xlu0 %v74
    %v76 = vpop.xlane.xlu0 %75
    %v77 = vrcp.pop 16.0
    %v78 = vmul.f32 %v67, %v77
    %v79 = vmul.f32 %v70, %v77
    %v80 = vmul.f32 %v73, %v77
    %v81 = vmul.f32 %v76, %v77
    %v82 = vadd.f32 %v78, 1e-09
    %v83 = vadd.f32 %v79, 1e-09
    %v84 = vadd.f32 %v80, 1e-09
    %v85 = vadd.f32 %v81, 1e-09
    %v86 = vrsqrt.pop %v82
    %v87 = vrsqrt.pop %v83
    %v88 = vrsqrt.pop %v84
    %v89 = vrsqrt.pop %v85
    %v90 = vmul.f32 %v56, %v86
    %v91 = vmul.f32 %v57, %v87
    %v92 = vmul.f32 %v58, %v88
    %v93 = vmul.f32 %v59, %v89
    %v94 = vld [vmem:[#allocation5] sm:$0xff]
    %v95 = vld [vmem:[#allocation5 + $0x8] sm:$0xff]
    %v96 = vmul.f32 %v94, 0.0625
    %v97 = vmul.f32 %v95, 0.0625
    %v98 = vld [vmem:[#allocation7] sm:$0xff]
    %v99 = vld [vmem:[#allocation7 + $0x8] sm:$0xff]
    %v100 = vsel %vm64, %v56, 0.0
    %v101 = vsel %vm64, %v58, 0.0
    %v102 = vadd.f32 %v100, %v101
    %v103 = vsel %vm64, %v57, 0.0
    %v104 = vsel %vm64, %v59, 0.0
    %v105 = vadd.f32 %v103, %v104
    %v107 = vsel %vm64, %v96, 0
    %v110 = vsel %vm64, %v97, 0
    %112 = vmatprep.subr.mxu0 0.0
    %113 = vmatpush1.msra.mxu0 0.0
    %114 = vmatprep.subr.mxu0 0.0
    %115 = vmatpush1.msra.mxu0 0.0
    %116 = vmatprep.subr.mxu0 0.0
    %117 = vmatpush1.msra.mxu0 0.0
    %118 = vmatprep.subr.mxu0 0.0
    %119 = vmatpush1.msra.mxu0 0.0
    %120 = vmatprep.subr.mxu0 0.0
    %121 = vmatpush1.msra.mxu0 0.0
    %122 = vmatprep.subr.mxu0 0.0
    %123 = vmatpush1.msra.mxu0 0.0
    %124 = vmatprep.subr.mxu0 0.0
    %125 = vmatpush1.msra.mxu0 0.0
    %126 = vmatprep.subr.mxu0 0.0
    %127 = vmatpush1.msra.mxu0 0.0
    %128 = vmatprep.subr.mxu0 0.0
    %129 = vmatpush1.msra.mxu0 0.0
    %130 = vmatprep.subr.mxu0 0.0
    %131 = vmatpush1.msra.mxu0 0.0
    %132 = vmatprep.subr.mxu0 0.0
    %133 = vmatpush1.msra.mxu0 0.0
    %134 = vmatprep.subr.mxu0 0.0
    %135 = vmatpush1.msra.mxu0 0.0
    %136 = vmatprep.subr.mxu0 0.0
    %137 = vmatpush1.msra.mxu0 0.0
    %138 = vmatprep.subr.mxu0 0.0
    %139 = vmatpush1.msra.mxu0 0.0
    %140 = vmatprep.subr.mxu0 0.0
    %141 = vmatpush1.msra.mxu0 %v91
    %142 = vmatprep.subr.mxu0 0.0
    %143 = vmatpush1.msra.mxu0 %v90
    %144 = vmatprep.subr.mxu0 0.0
    %145 = vmatpush2.msra.mxu0 0.0
    %146 = vmatprep.subr.mxu0 0.0
    %147 = vmatpush2.msra.mxu0 0.0
    %148 = vmatprep.subr.mxu0 0.0
    %149 = vmatpush2.msra.mxu0 0.0
    %150 = vmatprep.subr.mxu0 0.0
    %151 = vmatpush2.msra.mxu0 0.0
    %152 = vmatprep.subr.mxu0 0.0
    %153 = vmatpush2.msra.mxu0 0.0
    %154 = vmatprep.subr.mxu0 0.0
    %155 = vmatpush2.msra.mxu0 0.0
    %156 = vmatprep.subr.mxu0 0.0
    %157 = vmatpush2.msra.mxu0 0.0
    %158 = vmatprep.subr.mxu0 0.0
    %159 = vmatpush2.msra.mxu0 0.0
    %160 = vmatprep.subr.mxu0 0.0
    %161 = vmatpush2.msra.mxu0 0.0
    %162 = vmatprep.subr.mxu0 0.0
    %163 = vmatpush2.msra.mxu0 0.0
    %164 = vmatprep.subr.mxu0 0.0
    %165 = vmatpush2.msra.mxu0 0.0
    %166 = vmatprep.subr.mxu0 0.0
    %167 = vmatpush2.msra.mxu0 0.0
    %168 = vmatprep.subr.mxu0 0.0
    %169 = vmatpush2.msra.mxu0 0.0
    %170 = vmatprep.subr.mxu0 0.0
    %171 = vmatpush2.msra.mxu0 0.0
    %172 = vmatprep.subr.mxu0 0.0
    %173 = vmatpush2.msra.mxu0 0.0
    %174 = vmatprep.subr.mxu0 0.0
    %175 = vmatpush2.msra.mxu0 0.0
    %176 = vmatprep.mubr.f32.mxu0 0.0
    %177 = vmatmul.mubr.f32.gmra.mxu0 %v107
    %v178 = vpop.f32.mrf.mxu0
    %v179 = vadd.f32 0.0, %v178
    %v180 = vpop.f32.mrf.mxu0
    %181 = vmatprep.mubr.f32.mxu0 0.0
    %182 = vmatmul.mubr.f32.gmra.mxu0 %v110
    %v183 = vpop.f32.mrf.mxu0
    %v184 = vadd.f32 0.0, %v183
    %v185 = vpop.f32.mrf.mxu0
    %186 = vdwg.mxu0
    %v187 = vmax.f32 %v179, 0.0
    %v188 = vmax.f32 %v184, 0.0
    %v189 = vadd.f32 %v102, %v187
    %v190 = vadd.f32 %v105, %v188
    %191 = vmatprep.subr.mxu0 0.0
    %192 = vmatpush1.msra.mxu0 0.0
    %193 = vmatprep.subr.mxu0 0.0
    %194 = vmatpush1.msra.mxu0 0.0
    %195 = vmatprep.subr.mxu0 0.0
    %196 = vmatpush1.msra.mxu0 0.0
    %197 = vmatprep.subr.mxu0 0.0
    %198 = vmatpush1.msra.mxu0 0.0
    %199 = vmatprep.subr.mxu0 0.0
    %200 = vmatpush1.msra.mxu0 0.0
    %201 = vmatprep.subr.mxu0 0.0
    %202 = vmatpush1.msra.mxu0 0.0
    %203 = vmatprep.subr.mxu0 0.0
    %204 = vmatpush1.msra.mxu0 0.0
    %205 = vmatprep.subr.mxu0 0.0
    %206 = vmatpush1.msra.mxu0 0.0
    %207 = vmatprep.subr.mxu0 0.0
    %208 = vmatpush1.msra.mxu0 0.0
    %209 = vmatprep.subr.mxu0 0.0
    %210 = vmatpush1.msra.mxu0 0.0
    %211 = vmatprep.subr.mxu0 0.0
    %212 = vmatpush1.msra.mxu0 0.0
    %213 = vmatprep.subr.mxu0 0.0
    %214 = vmatpush1.msra.mxu0 0.0
    %215 = vmatprep.subr.mxu0 0.0
    %216 = vmatpush1.msra.mxu0 0.0
    %217 = vmatprep.subr.mxu0 0.0
    %218 = vmatpush1.msra.mxu0 0.0
    %219 = vmatprep.subr.mxu0 0.0
    %220 = vmatpush1.msra.mxu0 %v93
    %221 = vmatprep.subr.mxu0 0.0
    %222 = vmatpush1.msra.mxu0 %v92
    %223 = vmatprep.subr.mxu0 0.0
    %224 = vmatpush2.msra.mxu0 0.0
    %225 = vmatprep.subr.mxu0 0.0
    %226 = vmatpush2.msra.mxu0 0.0
    %227 = vmatprep.subr.mxu0 0.0
    %228 = vmatpush2.msra.mxu0 0.0
    %229 = vmatprep.subr.mxu0 0.0
    %230 = vmatpush2.msra.mxu0 0.0
    %231 = vmatprep.subr.mxu0 0.0
    %232 = vmatpush2.msra.mxu0 0.0
    %233 = vmatprep.subr.mxu0 0.0
    %234 = vmatpush2.msra.mxu0 0.0
    %235 = vmatprep.subr.mxu0 0.0
    %236 = vmatpush2.msra.mxu0 0.0
    %237 = vmatprep.subr.mxu0 0.0
    %238 = vmatpush2.msra.mxu0 0.0
    %239 = vmatprep.subr.mxu0 0.0
    %240 = vmatpush2.msra.mxu0 0.0
    %241 = vmatprep.subr.mxu0 0.0
    %242 = vmatpush2.msra.mxu0 0.0
    %243 = vmatprep.subr.mxu0 0.0
    %244 = vmatpush2.msra.mxu0 0.0
    %245 = vmatprep.subr.mxu0 0.0
    %246 = vmatpush2.msra.mxu0 0.0
    %247 = vmatprep.subr.mxu0 0.0
    %248 = vmatpush2.msra.mxu0 0.0
    %249 = vmatprep.subr.mxu0 0.0
    %250 = vmatpush2.msra.mxu0 0.0
    %251 = vmatprep.subr.mxu0 0.0
    %252 = vmatpush2.msra.mxu0 0.0
    %253 = vmatprep.subr.mxu0 0.0
    %254 = vmatpush2.msra.mxu0 0.0
    %255 = vmatprep.mubr.f32.mxu0 0.0
    %256 = vmatmul.mubr.f32.gmra.mxu0 %v107
    %v257 = vpop.f32.mrf.mxu0
    %v258 = vadd.f32 0.0, %v257
    %v259 = vpop.f32.mrf.mxu0
    %260 = vmatprep.mubr.f32.mxu0 0.0
    %261 = vmatmul.mubr.f32.gmra.mxu0 %v110
    %v262 = vpop.f32.mrf.mxu0
    %v263 = vadd.f32 0.0, %v262
    %v264 = vpop.f32.mrf.mxu0
    %265 = vdwg.mxu0
    %v266 = vmax.f32 %v258, 0.0
    %v267 = vmax.f32 %v263, 0.0
    %v268 = vadd.f32 %v189, %v266
    %v269 = vadd.f32 %v190, %v267
    %v271 = vsel %vm64, %v268, 0
    %v274 = vsel %vm64, %v269, 0
    %v277 = vsel %vm64, %v98, 0
    %v280 = vsel %vm64, %v99, 0
    %282 = vmatprep.subr.mxu0 0.0
    %283 = vmatpush1.xpose.msra.mxu0 0.0
    %284 = vmatprep.subr.mxu0 0.0
    %285 = vmatpush1.xpose.msra.mxu0 0.0
    %286 = vmatprep.subr.mxu0 0.0
    %287 = vmatpush1.xpose.msra.mxu0 0.0
    %288 = vmatprep.subr.mxu0 0.0
    %289 = vmatpush1.xpose.msra.mxu0 0.0
    %290 = vmatprep.subr.mxu0 0.0
    %291 = vmatpush1.xpose.msra.mxu0 0.0
    %292 = vmatprep.subr.mxu0 0.0
    %293 = vmatpush1.xpose.msra.mxu0 0.0
    %294 = vmatprep.subr.mxu0 0.0
    %295 = vmatpush1.xpose.msra.mxu0 0.0
    %296 = vmatprep.subr.mxu0 0.0
    %297 = vmatpush1.xpose.msra.mxu0 0.0
    %298 = vmatprep.subr.mxu0 0.0
    %299 = vmatpush1.xpose.msra.mxu0 0.0
    %300 = vmatprep.subr.mxu0 0.0
    %301 = vmatpush1.xpose.msra.mxu0 0.0
    %302 = vmatprep.subr.mxu0 0.0
    %303 = vmatpush1.xpose.msra.mxu0 0.0
    %304 = vmatprep.subr.mxu0 0.0
    %305 = vmatpush1.xpose.msra.mxu0 0.0
    %306 = vmatprep.subr.mxu0 0.0
    %307 = vmatpush1.xpose.msra.mxu0 0.0
    %308 = vmatprep.subr.mxu0 0.0
    %309 = vmatpush1.xpose.msra.mxu0 0.0
    %310 = vmatprep.subr.mxu0 0.0
    %311 = vmatpush1.xpose.msra.mxu0 %v280
    %312 = vmatprep.subr.mxu0 0.0
    %313 = vmatpush1.xpose.msra.mxu0 %v277
    %314 = vmatprep.subr.mxu0 0.0
    %315 = vmatpush2.xpose.msra.mxu0 0.0
    %316 = vmatprep.subr.mxu0 0.0
    %317 = vmatpush2.xpose.msra.mxu0 0.0
    %318 = vmatprep.subr.mxu0 0.0
    %319 = vmatpush2.xpose.msra.mxu0 0.0
    %320 = vmatprep.subr.mxu0 0.0
    %321 = vmatpush2.xpose.msra.mxu0 0.0
    %322 = vmatprep.subr.mxu0 0.0
    %323 = vmatpush2.xpose.msra.mxu0 0.0
    %324 = vmatprep.subr.mxu0 0.0
    %325 = vmatpush2.xpose.msra.mxu0 0.0
    %326 = vmatprep.subr.mxu0 0.0
    %327 = vmatpush2.xpose.msra.mxu0 0.0
    %328 = vmatprep.subr.mxu0 0.0
    %329 = vmatpush2.xpose.msra.mxu0 0.0
    %330 = vmatprep.subr.mxu0 0.0
    %331 = vmatpush2.xpose.msra.mxu0 0.0
    %332 = vmatprep.subr.mxu0 0.0
    %333 = vmatpush2.xpose.msra.mxu0 0.0
    %334 = vmatprep.subr.mxu0 0.0
    %335 = vmatpush2.xpose.msra.mxu0 0.0
    %336 = vmatprep.subr.mxu0 0.0
    %337 = vmatpush2.xpose.msra.mxu0 0.0
    %338 = vmatprep.subr.mxu0 0.0
    %339 = vmatpush2.xpose.msra.mxu0 0.0
    %340 = vmatprep.subr.mxu0 0.0
    %341 = vmatpush2.xpose.msra.mxu0 0.0
    %342 = vmatprep.subr.mxu0 0.0
    %343 = vmatpush2.xpose.msra.mxu0 0.0
    %344 = vmatprep.subr.mxu0 0.0
    %345 = vmatpush2.xpose.msra.mxu0 0.0
    %346 = vmatprep.mubr.f32.mxu0 0.0
    %347 = vmatmul.mubr.f32.gmra.mxu0 %v271
    %v348 = vpop.f32.mrf.mxu0
    %v349 = vadd.f32 0.0, %v348
    %v350 = vpop.f32.mrf.mxu0
    %351 = vmatprep.mubr.f32.mxu0 0.0
    %352 = vmatmul.mubr.f32.gmra.mxu0 %v274
    %v353 = vpop.f32.mrf.mxu0
    %v354 = vadd.f32 0.0, %v353
    %v355 = vpop.f32.mrf.mxu0
    %356 = vdwg.mxu0
    %357 = vst.msk [vmem:[#allocation8] sm:$0xff] %vm64, %v349
    %358 = vst.msk [vmem:[#allocation8 + $0x8] sm:$0xff] %vm64, %v354
    // Predicated region
    $region26: #{tpu_custom_call.1} parent=1 // pred_check
      _
    $region27: #{tpu_custom_call.1} parent=1 // pred_check_branch
      %360 = sbr.rel (0) target = $region29
    $region28: #{tpu_custom_call.1} parent=1 // pred_region
      %s362 = ssub.s32 256, 256
      %363 = vsyncadd [#allocation4], %s362
      %s364 = sshll.u32 [#allocation8], 4
      %s365 = int_to_ptr.vmem [resolvable:$true] %s364
      %370 = dma.vmem_to_hbm [thread:$0]  %s365, 256, %s3, [#allocation4], 128, 128, 8
    $region29: #{tpu_custom_call.1} parent=1 // pred_fallthru
      _
    // Predicated region
    $region30: #{tpu_custom_call.1} parent=1 // pred_check
      _
    $region31: #{tpu_custom_call.1} parent=1 // pred_check_branch
      %372 = sbr.rel (0) target = $region33
    $region32: #{tpu_custom_call.1} parent=1 // pred_region
      %373 = dma.done [#allocation4], 256
    $region33: #{tpu_custom_call.1} parent=1 // pred_fallthru
      _
    %374 = vsyncpa [#allocation3], 1
    %375 = vsyncpa [#allocation6], 1
    %376 = vsyncpa [#allocation4], 1

</llo_original>
